<compile_context>
chip_gen: v7x
topology: tpu7x:2x2x1
jax: 0.10.0
libtpu: 0.0.40
codegen_flags: <defaults>
</compile_context>

<pallas_src>
import jax
import jax.numpy as jnp
from jax.experimental import pallas as pl
from jax.experimental.pallas import tpu as pltpu

# ----------------------------- static config --------------------------------
D_IN = 8
D_PC = 8
D_PIX = 4
D_HIDDEN = 32
N_BLOCKS = 3
COMBINE_LAYER = 2
USE_SPADE = True               # SPADE path: x = scale_z(z) * x + lin_z(z)
# beta == 0 -> nn.ReLU() activation

D_TOTAL = D_IN + D_PC + D_PIX        # rgb_mlp input width (20)
D_ALPHA_IN = D_IN + D_PC             # alpha_mlp input width (16)
D_Z = D_PC + D_PIX                   # fused latent width (12)
D_FUSED = 2 * D_HIDDEN               # fused hidden width (64): [rgb | alpha]
N_LIN_Z = min(COMBINE_LAYER, N_BLOCKS)

COMPUTE_DTYPE = jnp.bfloat16         # matmul operand dtype (accumulate in f32)
TILE_N_DEFAULT = 512                 # rows per grid step (multiple of 16)

PARAM_NAMES = ("W_in", "b_in", "W_z", "b_z", "S_z", "sb_z",
               "W0", "b0", "W1", "b1", "W_out", "b_out")
FUSED_NAMES = ("W_in", "b_in", "WZ", "bZ", "W0", "b0", "W1", "b1",
               "W_out", "b_out")


# ----------------------------- parameter init -------------------------------
def init_resmlp_params(key, d_in, d_latent, d_out):
    """Deterministic synthetic params for one ResMLP (shapes follow __init__)."""
    ks = jax.random.split(key, 6)

    def kaiming(k, shape, fan_in):
        return jax.random.normal(k, shape, jnp.float32) * (2.0 / fan_in) ** 0.5

    return {
        # lin_in: (d_in -> d_hidden); stored transposed (in, out) for x @ W
        "W_in":  kaiming(ks[0], (d_in, D_HIDDEN), d_in),
        "b_in":  jnp.zeros((1, D_HIDDEN), jnp.float32),
        # lin_z / scale_z stacks: (n_lin_z, d_latent, d_hidden)
        "W_z":   kaiming(ks[1], (N_LIN_Z, d_latent, D_HIDDEN), d_latent),
        "b_z":   jnp.zeros((N_LIN_Z, D_HIDDEN), jnp.float32),
        "S_z":   kaiming(ks[2], (N_LIN_Z, d_latent, D_HIDDEN), d_latent),
        "sb_z":  jnp.zeros((N_LIN_Z, D_HIDDEN), jnp.float32),
        # FCResBlock fc_0 / fc_1 stacks: (n_blocks, d_hidden, d_hidden)
        "W0":    kaiming(ks[3], (N_BLOCKS, D_HIDDEN, D_HIDDEN), D_HIDDEN),
        "b0":    jnp.zeros((N_BLOCKS, D_HIDDEN), jnp.float32),
        # PyTorch zero-inits fc_1; use small random so the residual path is exercised.
        "W1":    jax.random.normal(ks[4], (N_BLOCKS, D_HIDDEN, D_HIDDEN), jnp.float32) * 0.02,
        "b1":    jnp.zeros((N_BLOCKS, D_HIDDEN), jnp.float32),
        # lin_out: (d_hidden -> d_out)
        "W_out": kaiming(ks[5], (D_HIDDEN, d_out), D_HIDDEN),
        "b_out": jnp.zeros((1, d_out), jnp.float32),
    }


# ----------------------------- host-side weight fusion ----------------------
def fuse_params(alpha_params, rgb_params):
    """Fuse both MLPs into one block-diagonal 64-hidden MLP.

    Hidden-lane layout: rgb -> lanes [0:32], alpha -> lanes [32:64].
    Fused z input is zx[:, 8:20] (12 lanes); alpha's lin_z/scale_z are
    zero-padded over the pix-latent rows, so the math is exact.
    """
    ap, rp = alpha_params, rgb_params
    H = D_HIDDEN
    cd = COMPUTE_DTYPE

    W_in = jnp.concatenate([rp["W_in"], ap["W_in"]], axis=1)            # (8, 64)
    b_in = jnp.concatenate([rp["b_in"], ap["b_in"]], axis=1)            # (1, 64)

    def pad_alpha_z(w):                                                 # (n,8,H)->(n,12,H)
        return jnp.pad(w, ((0, 0), (0, D_PIX), (0, 0)))

    Wz_t = jnp.concatenate([rp["W_z"], pad_alpha_z(ap["W_z"])], axis=2)  # (2, 12, 64)
    Wz_s = jnp.concatenate([rp["S_z"], pad_alpha_z(ap["S_z"])], axis=2)  # (2, 12, 64)
    WZ = jnp.concatenate([Wz_t, Wz_s], axis=2)                           # (2, 12, 128)
    bZ = jnp.concatenate([rp["b_z"], ap["b_z"], rp["sb_z"], ap["sb_z"]],
                         axis=1)[:, None, :]                             # (2, 1, 128)

    def blkdiag(wr, wa):                                                 # (n,H,H)x2 -> (n,2H,2H)
        zeros = jnp.zeros_like(wr)
        top = jnp.concatenate([wr, zeros], axis=2)
        bot = jnp.concatenate([zeros, wa], axis=2)
        return jnp.concatenate([top, bot], axis=1)

    W0 = blkdiag(rp["W0"], ap["W0"])                                     # (3, 64, 64)
    W1 = blkdiag(rp["W1"], ap["W1"])                                     # (3, 64, 64)
    b0 = jnp.concatenate([rp["b0"], ap["b0"]], axis=1)[:, None, :]       # (3, 1, 64)
    b1 = jnp.concatenate([rp["b1"], ap["b1"]], axis=1)[:, None, :]       # (3, 1, 64)

    # Fused lin_out emits [rgb(3) | alpha(1)] directly -> no in-kernel concat.
    W_out = jnp.zeros((D_FUSED, 4), jnp.float32)
    W_out = W_out.at[:H, :3].set(rp["W_out"])
    W_out = W_out.at[H:, 3:].set(ap["W_out"])
    b_out = jnp.concatenate([rp["b_out"], ap["b_out"]], axis=1)          # (1, 4)

    return {
        "W_in": W_in.astype(cd), "b_in": b_in,
        "WZ": WZ.astype(cd), "bZ": bZ,
        "W0": W0.astype(cd), "b0": b0,
        "W1": W1.astype(cd), "b1": b1,
        "W_out": W_out.astype(cd), "b_out": b_out,
    }


# ----------------------------- Pallas kernel --------------------------------
def resmlp_disent_kernel(zx_ref, w_in, b_in, wz, bz, w0, b0, w1, b1,
                         w_out, b_out, out_ref):
    relu = lambda v: jnp.maximum(v, 0.0)
    cd = COMPUTE_DTYPE

    zx = zx_ref[...]                       # (tile_n, 20) bf16
    x_in = zx[:, :D_IN]                    # (tile_n, 8)
    z = zx[:, D_IN:]                       # (tile_n, 12)

    # fused lin_in -> (tile_n, 64) f32
    x = jnp.dot(x_in, w_in[...], preferred_element_type=jnp.float32) + b_in[...]

    for blk in range(N_BLOCKS):
        if blk < COMBINE_LAYER:
            # one lane-full z @ (12,128) matmul = lin_z + scale_z of BOTH MLPs
            tzsz = jnp.dot(z, wz[blk], preferred_element_type=jnp.float32) + bz[blk]
            tz = tzsz[:, :D_FUSED]
            sz = tzsz[:, D_FUSED:]
            x = sz * x + tz if USE_SPADE else x + tz
        # FCResBlock: x + fc_1(relu(fc_0(relu(x))))   (identity shortcut)
        net = jnp.dot(relu(x).astype(cd), w0[blk],
                      preferred_element_type=jnp.float32) + b0[blk]
        dx = jnp.dot(relu(net).astype(cd), w1[blk],
                     preferred_element_type=jnp.float32) + b1[blk]
        x = x + dx

    out = jnp.dot(relu(x).astype(cd), w_out[...],
                  preferred_element_type=jnp.float32) + b_out[...]
    out_ref[...] = out.astype(out_ref.dtype)


def _round_up(n, m):
    return (n + m - 1) // m * m


def resmlp_disent(zx, alpha_params, rgb_params, reshape_inner_dim,
                  tile_n=TILE_N_DEFAULT):
    N, D = zx.shape
    assert D == D_TOTAL
    assert N % reshape_inner_dim == 0

    fused = fuse_params(alpha_params, rgb_params)
    flat = [fused[k] for k in FUSED_NAMES]

    tile_n = min(tile_n, _round_up(N, 16))     # bf16 sublane tile = 16 rows
    n_pad = _round_up(N, tile_n)

    zx_c = zx.astype(COMPUTE_DTYPE)            # halves the only large HBM stream
    if n_pad != N:
        zx_c = jnp.pad(zx_c, ((0, n_pad - N), (0, 0)))

    def full_spec(arr):
        nd = arr.ndim                          # whole (tiny) weight slab, resident in VMEM
        return pl.BlockSpec(arr.shape, lambda i, _nd=nd: (0,) * _nd)

    out = pl.pallas_call(
        resmlp_disent_kernel,
        out_shape=jax.ShapeDtypeStruct((n_pad, 4), jnp.float32),
        grid_spec=pl.GridSpec(
            grid=(n_pad // tile_n,),
            in_specs=[pl.BlockSpec((tile_n, D_TOTAL), lambda i: (i, 0))]
                     + [full_spec(a) for a in flat],
            out_specs=pl.BlockSpec((tile_n, 4), lambda i: (i, 0)),
        ),
        compiler_params=pltpu.CompilerParams(
            dimension_semantics=("parallel",)),
    )(zx_c, *flat)

    out = out[:N]
    # PyTorch reshapes x at combine_layer; every subsequent op is per-row, so
    # applying the view change on the final output is mathematically identical.
    return out.reshape(-1, reshape_inner_dim, 4)


# ----------------------------- plain-JAX references -------------------------
def _mlp_forward_ref(zx, d_in, p, compute_dtype):
    """Unfused ResMLP forward; compute_dtype = matmul operand dtype."""
    relu = lambda v: jnp.maximum(v, 0.0)
    cd = compute_dtype

    def dot(a, w):
        return jnp.dot(a.astype(cd), w.astype(cd),
                       preferred_element_type=jnp.float32)

    zxc = zx.astype(cd)
    x = zxc[:, :d_in]
    z = zxc[:, d_in:]
    x = dot(x, p["W_in"]) + p["b_in"][0]
    for blk in range(N_BLOCKS):
        if blk < COMBINE_LAYER:
            tz = dot(z, p["W_z"][blk]) + p["b_z"][blk]
            if USE_SPADE:
                sz = dot(z, p["S_z"][blk]) + p["sb_z"][blk]
                x = sz * x + tz
            else:
                x = x + tz
        net = dot(relu(x), p["W0"][blk]) + p["b0"][blk]
        dx = dot(relu(net), p["W1"][blk]) + p["b1"][blk]
        x = x + dx
    return dot(relu(x), p["W_out"]) + p["b_out"][0]


def reference(zx, alpha_params, rgb_params, reshape_inner_dim, compute_dtype):
    alpha = _mlp_forward_ref(zx[:, :D_ALPHA_IN], D_IN, alpha_params, compute_dtype)
    rgb = _mlp_forward_ref(zx, D_IN, rgb_params, compute_dtype)
    return jnp.concatenate([rgb, alpha], axis=-1).reshape(-1, reshape_inner_dim, 4)


def _check(out, zx, alpha_params, rgb_params, reshape_inner_dim):
    # (a) tight check against a bf16-matched reference (same math, unfused):
    #     validates kernel mechanics (fusion, block specs, SPADE order) exactly.
    ref_bf = reference(zx, alpha_params, rgb_params, reshape_inner_dim, COMPUTE_DTYPE)
    assert out.shape == ref_bf.shape, (out.shape, ref_bf.shape)
    assert bool(jnp.allclose(out, ref_bf, atol=2e-3, rtol=2e-3)), \
        "mismatch vs bf16-matched reference"
    # (b) documented loose check against the pure-f32 (PyTorch-semantics)
    #     reference: only bf16 operand quantization separates the two.
    ref32 = reference(zx, alpha_params, rgb_params, reshape_inner_dim, jnp.float32)
    err = float(jnp.max(jnp.abs(out - ref32)))
    scale = float(jnp.max(jnp.abs(ref32)))
    assert err <= 3e-2 * scale + 1e-2, \
        f"bf16-vs-f32 deviation too large: {err} (output scale {scale})"


# ----------------------------- main ------------------------------------------
if __name__ == "__main__":
    key = jax.random.PRNGKey(0)
    k_zx1, k_zx2, k_a, k_r = jax.random.split(key, 4)

    alpha_params = init_resmlp_params(k_a, D_IN, D_PC, d_out=1)            # d_latent=8
    rgb_params = init_resmlp_params(k_r, D_IN, D_PC + D_PIX, d_out=3)      # d_latent=12

    # Small case (single tile, exercises row padding + reshape_inner_dim view).
    N1, R1 = 16, 8
    zx1 = jax.random.normal(k_zx1, (N1, D_TOTAL), jnp.float32)
    out1 = jax.block_until_ready(resmlp_disent(zx1, alpha_params, rgb_params, R1))
    assert out1.shape == (N1 // R1, R1, 4), out1.shape
    _check(out1, zx1, alpha_params, rgb_params, R1)

    # Multi-tile case (TILE_N=512 -> 4 grid steps): exercises pipelining and
    # megacore sharding of the row grid.
    N2, R2 = 2048, 8
    zx2 = jax.random.normal(k_zx2, (N2, D_TOTAL), jnp.float32)
    out2 = jax.block_until_ready(resmlp_disent(zx2, alpha_params, rgb_params, R2))
    assert out2.shape == (N2 // R2, R2, 4), out2.shape
    _check(out2, zx2, alpha_params, rgb_params, R2)

    print("KERNEL_OK")
</pallas_src>

<mosaic_0001>
module attributes {stable_mosaic.version = 11 : i64} {
  func.func @resmlp_disent_kernel(%arg0: i32, %arg1: memref<16x20xbf16, #tpu.memory_space<vmem>>, %arg2: memref<8x64xbf16, #tpu.memory_space<vmem>>, %arg3: memref<1x64xf32, #tpu.memory_space<vmem>>, %arg4: memref<2x12x128xbf16, #tpu.memory_space<vmem>>, %arg5: memref<2x1x128xf32, #tpu.memory_space<vmem>>, %arg6: memref<3x64x64xbf16, #tpu.memory_space<vmem>>, %arg7: memref<3x1x64xf32, #tpu.memory_space<vmem>>, %arg8: memref<3x64x64xbf16, #tpu.memory_space<vmem>>, %arg9: memref<3x1x64xf32, #tpu.memory_space<vmem>>, %arg10: memref<64x4xbf16, #tpu.memory_space<vmem>>, %arg11: memref<1x4xf32, #tpu.memory_space<vmem>>, %arg12: memref<16x4xf32, #tpu.memory_space<vmem>>) attributes {dimension_semantics = [#tpu.dimension_semantics<parallel>], iteration_bounds = array<i64: 1>, scalar_prefetch = 0 : i64, scratch_operands = 0 : i64, tpu.core_type = #tpu.core_type<tc>, window_params = [{transform_indices = @transform_0, window_bounds = array<i64: 16, 20>}, {pipeline_mode = #tpu.pipeline_mode<synchronous>, transform_indices = @transform_1, window_bounds = array<i64: 8, 64>}, {pipeline_mode = #tpu.pipeline_mode<synchronous>, transform_indices = @transform_2, window_bounds = array<i64: 1, 64>}, {pipeline_mode = #tpu.pipeline_mode<synchronous>, transform_indices = @transform_3, window_bounds = array<i64: 2, 12, 128>}, {pipeline_mode = #tpu.pipeline_mode<synchronous>, transform_indices = @transform_4, window_bounds = array<i64: 2, 1, 128>}, {pipeline_mode = #tpu.pipeline_mode<synchronous>, transform_indices = @transform_5, window_bounds = array<i64: 3, 64, 64>}, {pipeline_mode = #tpu.pipeline_mode<synchronous>, transform_indices = @transform_6, window_bounds = array<i64: 3, 1, 64>}, {pipeline_mode = #tpu.pipeline_mode<synchronous>, transform_indices = @transform_7, window_bounds = array<i64: 3, 64, 64>}, {pipeline_mode = #tpu.pipeline_mode<synchronous>, transform_indices = @transform_8, window_bounds = array<i64: 3, 1, 64>}, {pipeline_mode = #tpu.pipeline_mode<synchronous>, transform_indices = @transform_9, window_bounds = array<i64: 64, 4>}, {pipeline_mode = #tpu.pipeline_mode<synchronous>, transform_indices = @transform_10, window_bounds = array<i64: 1, 4>}, {transform_indices = @transform_11, window_bounds = array<i64: 16, 4>}]} {
    %c0 = arith.constant 0 : index
    %c0_0 = arith.constant 0 : index
    %0 = vector.load %arg1[%c0, %c0_0] : memref<16x20xbf16, #tpu.memory_space<vmem>>, vector<16x20xbf16>
    %1 = vector.extract_strided_slice %0 {offsets = [0, 0], sizes = [16, 8], strides = [1, 1]} : vector<16x20xbf16> to vector<16x8xbf16>
    %2 = vector.extract_strided_slice %0 {offsets = [0, 8], sizes = [16, 12], strides = [1, 1]} : vector<16x20xbf16> to vector<16x12xbf16>
    %c0_1 = arith.constant 0 : index
    %c0_2 = arith.constant 0 : index
    %3 = vector.load %arg2[%c0_1, %c0_2] : memref<8x64xbf16, #tpu.memory_space<vmem>>, vector<8x64xbf16>
    %cst = arith.constant dense<0.000000e+00> : vector<16x64xf32>
    %4 = tpu.matmul %1, %3, %cst {dimension_numbers = #tpu.dot_dimension_numbers<[1], [0], [0], [1], [0, 0, 1, 1], [], []>} : vector<16x8xbf16>, vector<8x64xbf16>, vector<16x64xf32> -> vector<16x64xf32>
    %c0_3 = arith.constant 0 : index
    %c0_4 = arith.constant 0 : index
    %5 = vector.load %arg3[%c0_3, %c0_4] : memref<1x64xf32, #tpu.memory_space<vmem>>, vector<1x64xf32>
    %6 = vector.broadcast %5 : vector<1x64xf32> to vector<16x64xf32>
    %7 = arith.addf %4, %6 : vector<16x64xf32>
    %c0_5 = arith.constant 0 : index
    %c0_6 = arith.constant 0 : index
    %c0_7 = arith.constant 0 : index
    %8 = vector.load %arg4[%c0_5, %c0_6, %c0_7] : memref<2x12x128xbf16, #tpu.memory_space<vmem>>, vector<1x12x128xbf16>
    %9 = vector.shape_cast %8 : vector<1x12x128xbf16> to vector<12x128xbf16>
    %cst_8 = arith.constant dense<0.000000e+00> : vector<16x128xf32>
    %10 = tpu.matmul %2, %9, %cst_8 {dimension_numbers = #tpu.dot_dimension_numbers<[1], [0], [0], [1], [0, 0, 1, 1], [], []>} : vector<16x12xbf16>, vector<12x128xbf16>, vector<16x128xf32> -> vector<16x128xf32>
    %c0_9 = arith.constant 0 : index
    %c0_10 = arith.constant 0 : index
    %c0_11 = arith.constant 0 : index
    %11 = vector.load %arg5[%c0_9, %c0_10, %c0_11] : memref<2x1x128xf32, #tpu.memory_space<vmem>>, vector<1x1x128xf32>
    %12 = vector.shape_cast %11 : vector<1x1x128xf32> to vector<1x128xf32>
    %13 = vector.broadcast %12 : vector<1x128xf32> to vector<16x128xf32>
    %14 = arith.addf %10, %13 : vector<16x128xf32>
    %15 = vector.extract_strided_slice %14 {offsets = [0, 0], sizes = [16, 64], strides = [1, 1]} : vector<16x128xf32> to vector<16x64xf32>
    %16 = vector.extract_strided_slice %14 {offsets = [0, 64], sizes = [16, 64], strides = [1, 1]} : vector<16x128xf32> to vector<16x64xf32>
    %17 = arith.mulf %16, %7 : vector<16x64xf32>
    %18 = arith.addf %17, %15 : vector<16x64xf32>
    %cst_12 = arith.constant 0.000000e+00 : f32
    %19 = vector.broadcast %cst_12 : f32 to vector<16x64xf32>
    %20 = arith.maximumf %18, %19 : vector<16x64xf32>
    %21 = arith.truncf %20 : vector<16x64xf32> to vector<16x64xbf16>
    %c0_13 = arith.constant 0 : index
    %c0_14 = arith.constant 0 : index
    %c0_15 = arith.constant 0 : index
    %22 = vector.load %arg6[%c0_13, %c0_14, %c0_15] : memref<3x64x64xbf16, #tpu.memory_space<vmem>>, vector<1x64x64xbf16>
    %23 = vector.shape_cast %22 : vector<1x64x64xbf16> to vector<64x64xbf16>
    %cst_16 = arith.constant dense<0.000000e+00> : vector<16x64xf32>
    %24 = tpu.matmul %21, %23, %cst_16 {dimension_numbers = #tpu.dot_dimension_numbers<[1], [0], [0], [1], [0, 0, 1, 1], [], []>} : vector<16x64xbf16>, vector<64x64xbf16>, vector<16x64xf32> -> vector<16x64xf32>
    %c0_17 = arith.constant 0 : index
    %c0_18 = arith.constant 0 : index
    %c0_19 = arith.constant 0 : index
    %25 = vector.load %arg7[%c0_17, %c0_18, %c0_19] : memref<3x1x64xf32, #tpu.memory_space<vmem>>, vector<1x1x64xf32>
    %26 = vector.shape_cast %25 : vector<1x1x64xf32> to vector<1x64xf32>
    %27 = vector.broadcast %26 : vector<1x64xf32> to vector<16x64xf32>
    %28 = arith.addf %24, %27 : vector<16x64xf32>
    %cst_20 = arith.constant 0.000000e+00 : f32
    %29 = vector.broadcast %cst_20 : f32 to vector<16x64xf32>
    %30 = arith.maximumf %28, %29 : vector<16x64xf32>
    %31 = arith.truncf %30 : vector<16x64xf32> to vector<16x64xbf16>
    %c0_21 = arith.constant 0 : index
    %c0_22 = arith.constant 0 : index
    %c0_23 = arith.constant 0 : index
    %32 = vector.load %arg8[%c0_21, %c0_22, %c0_23] : memref<3x64x64xbf16, #tpu.memory_space<vmem>>, vector<1x64x64xbf16>
    %33 = vector.shape_cast %32 : vector<1x64x64xbf16> to vector<64x64xbf16>
    %cst_24 = arith.constant dense<0.000000e+00> : vector<16x64xf32>
    %34 = tpu.matmul %31, %33, %cst_24 {dimension_numbers = #tpu.dot_dimension_numbers<[1], [0], [0], [1], [0, 0, 1, 1], [], []>} : vector<16x64xbf16>, vector<64x64xbf16>, vector<16x64xf32> -> vector<16x64xf32>
    %c0_25 = arith.constant 0 : index
    %c0_26 = arith.constant 0 : index
    %c0_27 = arith.constant 0 : index
    %35 = vector.load %arg9[%c0_25, %c0_26, %c0_27] : memref<3x1x64xf32, #tpu.memory_space<vmem>>, vector<1x1x64xf32>
    %36 = vector.shape_cast %35 : vector<1x1x64xf32> to vector<1x64xf32>
    %37 = vector.broadcast %36 : vector<1x64xf32> to vector<16x64xf32>
    %38 = arith.addf %34, %37 : vector<16x64xf32>
    %39 = arith.addf %18, %38 : vector<16x64xf32>
    %c1 = arith.constant 1 : index
    %c0_28 = arith.constant 0 : index
    %c0_29 = arith.constant 0 : index
    %40 = vector.load %arg4[%c1, %c0_28, %c0_29] : memref<2x12x128xbf16, #tpu.memory_space<vmem>>, vector<1x12x128xbf16>
    %41 = vector.shape_cast %40 : vector<1x12x128xbf16> to vector<12x128xbf16>
    %cst_30 = arith.constant dense<0.000000e+00> : vector<16x128xf32>
    %42 = tpu.matmul %2, %41, %cst_30 {dimension_numbers = #tpu.dot_dimension_numbers<[1], [0], [0], [1], [0, 0, 1, 1], [], []>} : vector<16x12xbf16>, vector<12x128xbf16>, vector<16x128xf32> -> vector<16x128xf32>
    %c1_31 = arith.constant 1 : index
    %c0_32 = arith.constant 0 : index
    %c0_33 = arith.constant 0 : index
    %43 = vector.load %arg5[%c1_31, %c0_32, %c0_33] : memref<2x1x128xf32, #tpu.memory_space<vmem>>, vector<1x1x128xf32>
    %44 = vector.shape_cast %43 : vector<1x1x128xf32> to vector<1x128xf32>
    %45 = vector.broadcast %44 : vector<1x128xf32> to vector<16x128xf32>
    %46 = arith.addf %42, %45 : vector<16x128xf32>
    %47 = vector.extract_strided_slice %46 {offsets = [0, 0], sizes = [16, 64], strides = [1, 1]} : vector<16x128xf32> to vector<16x64xf32>
    %48 = vector.extract_strided_slice %46 {offsets = [0, 64], sizes = [16, 64], strides = [1, 1]} : vector<16x128xf32> to vector<16x64xf32>
    %49 = arith.mulf %48, %39 : vector<16x64xf32>
    %50 = arith.addf %49, %47 : vector<16x64xf32>
    %cst_34 = arith.constant 0.000000e+00 : f32
    %51 = vector.broadcast %cst_34 : f32 to vector<16x64xf32>
    %52 = arith.maximumf %50, %51 : vector<16x64xf32>
    %53 = arith.truncf %52 : vector<16x64xf32> to vector<16x64xbf16>
    %c1_35 = arith.constant 1 : index
    %c0_36 = arith.constant 0 : index
    %c0_37 = arith.constant 0 : index
    %54 = vector.load %arg6[%c1_35, %c0_36, %c0_37] : memref<3x64x64xbf16, #tpu.memory_space<vmem>>, vector<1x64x64xbf16>
    %55 = vector.shape_cast %54 : vector<1x64x64xbf16> to vector<64x64xbf16>
    %cst_38 = arith.constant dense<0.000000e+00> : vector<16x64xf32>
    %56 = tpu.matmul %53, %55, %cst_38 {dimension_numbers = #tpu.dot_dimension_numbers<[1], [0], [0], [1], [0, 0, 1, 1], [], []>} : vector<16x64xbf16>, vector<64x64xbf16>, vector<16x64xf32> -> vector<16x64xf32>
    %c1_39 = arith.constant 1 : index
    %c0_40 = arith.constant 0 : index
    %c0_41 = arith.constant 0 : index
    %57 = vector.load %arg7[%c1_39, %c0_40, %c0_41] : memref<3x1x64xf32, #tpu.memory_space<vmem>>, vector<1x1x64xf32>
    %58 = vector.shape_cast %57 : vector<1x1x64xf32> to vector<1x64xf32>
    %59 = vector.broadcast %58 : vector<1x64xf32> to vector<16x64xf32>
    %60 = arith.addf %56, %59 : vector<16x64xf32>
    %cst_42 = arith.constant 0.000000e+00 : f32
    %61 = vector.broadcast %cst_42 : f32 to vector<16x64xf32>
    %62 = arith.maximumf %60, %61 : vector<16x64xf32>
    %63 = arith.truncf %62 : vector<16x64xf32> to vector<16x64xbf16>
    %c1_43 = arith.constant 1 : index
    %c0_44 = arith.constant 0 : index
    %c0_45 = arith.constant 0 : index
    %64 = vector.load %arg8[%c1_43, %c0_44, %c0_45] : memref<3x64x64xbf16, #tpu.memory_space<vmem>>, vector<1x64x64xbf16>
    %65 = vector.shape_cast %64 : vector<1x64x64xbf16> to vector<64x64xbf16>
    %cst_46 = arith.constant dense<0.000000e+00> : vector<16x64xf32>
    %66 = tpu.matmul %63, %65, %cst_46 {dimension_numbers = #tpu.dot_dimension_numbers<[1], [0], [0], [1], [0, 0, 1, 1], [], []>} : vector<16x64xbf16>, vector<64x64xbf16>, vector<16x64xf32> -> vector<16x64xf32>
    %c1_47 = arith.constant 1 : index
    %c0_48 = arith.constant 0 : index
    %c0_49 = arith.constant 0 : index
    %67 = vector.load %arg9[%c1_47, %c0_48, %c0_49] : memref<3x1x64xf32, #tpu.memory_space<vmem>>, vector<1x1x64xf32>
    %68 = vector.shape_cast %67 : vector<1x1x64xf32> to vector<1x64xf32>
    %69 = vector.broadcast %68 : vector<1x64xf32> to vector<16x64xf32>
    %70 = arith.addf %66, %69 : vector<16x64xf32>
    %71 = arith.addf %50, %70 : vector<16x64xf32>
    %cst_50 = arith.constant 0.000000e+00 : f32
    %72 = vector.broadcast %cst_50 : f32 to vector<16x64xf32>
    %73 = arith.maximumf %71, %72 : vector<16x64xf32>
    %74 = arith.truncf %73 : vector<16x64xf32> to vector<16x64xbf16>
    %c2 = arith.constant 2 : index
    %c0_51 = arith.constant 0 : index
    %c0_52 = arith.constant 0 : index
    %75 = vector.load %arg6[%c2, %c0_51, %c0_52] : memref<3x64x64xbf16, #tpu.memory_space<vmem>>, vector<1x64x64xbf16>
    %76 = vector.shape_cast %75 : vector<1x64x64xbf16> to vector<64x64xbf16>
    %cst_53 = arith.constant dense<0.000000e+00> : vector<16x64xf32>
    %77 = tpu.matmul %74, %76, %cst_53 {dimension_numbers = #tpu.dot_dimension_numbers<[1], [0], [0], [1], [0, 0, 1, 1], [], []>} : vector<16x64xbf16>, vector<64x64xbf16>, vector<16x64xf32> -> vector<16x64xf32>
    %c2_54 = arith.constant 2 : index
    %c0_55 = arith.constant 0 : index
    %c0_56 = arith.constant 0 : index
    %78 = vector.load %arg7[%c2_54, %c0_55, %c0_56] : memref<3x1x64xf32, #tpu.memory_space<vmem>>, vector<1x1x64xf32>
    %79 = vector.shape_cast %78 : vector<1x1x64xf32> to vector<1x64xf32>
    %80 = vector.broadcast %79 : vector<1x64xf32> to vector<16x64xf32>
    %81 = arith.addf %77, %80 : vector<16x64xf32>
    %cst_57 = arith.constant 0.000000e+00 : f32
    %82 = vector.broadcast %cst_57 : f32 to vector<16x64xf32>
    %83 = arith.maximumf %81, %82 : vector<16x64xf32>
    %84 = arith.truncf %83 : vector<16x64xf32> to vector<16x64xbf16>
    %c2_58 = arith.constant 2 : index
    %c0_59 = arith.constant 0 : index
    %c0_60 = arith.constant 0 : index
    %85 = vector.load %arg8[%c2_58, %c0_59, %c0_60] : memref<3x64x64xbf16, #tpu.memory_space<vmem>>, vector<1x64x64xbf16>
    %86 = vector.shape_cast %85 : vector<1x64x64xbf16> to vector<64x64xbf16>
    %cst_61 = arith.constant dense<0.000000e+00> : vector<16x64xf32>
    %87 = tpu.matmul %84, %86, %cst_61 {dimension_numbers = #tpu.dot_dimension_numbers<[1], [0], [0], [1], [0, 0, 1, 1], [], []>} : vector<16x64xbf16>, vector<64x64xbf16>, vector<16x64xf32> -> vector<16x64xf32>
    %c2_62 = arith.constant 2 : index
    %c0_63 = arith.constant 0 : index
    %c0_64 = arith.constant 0 : index
    %88 = vector.load %arg9[%c2_62, %c0_63, %c0_64] : memref<3x1x64xf32, #tpu.memory_space<vmem>>, vector<1x1x64xf32>
    %89 = vector.shape_cast %88 : vector<1x1x64xf32> to vector<1x64xf32>
    %90 = vector.broadcast %89 : vector<1x64xf32> to vector<16x64xf32>
    %91 = arith.addf %87, %90 : vector<16x64xf32>
    %92 = arith.addf %71, %91 : vector<16x64xf32>
    %cst_65 = arith.constant 0.000000e+00 : f32
    %93 = vector.broadcast %cst_65 : f32 to vector<16x64xf32>
    %94 = arith.maximumf %92, %93 : vector<16x64xf32>
    %95 = arith.truncf %94 : vector<16x64xf32> to vector<16x64xbf16>
    %c0_66 = arith.constant 0 : index
    %c0_67 = arith.constant 0 : index
    %96 = vector.load %arg10[%c0_66, %c0_67] : memref<64x4xbf16, #tpu.memory_space<vmem>>, vector<64x4xbf16>
    %cst_68 = arith.constant dense<0.000000e+00> : vector<16x4xf32>
    %97 = tpu.matmul %95, %96, %cst_68 {dimension_numbers = #tpu.dot_dimension_numbers<[1], [0], [0], [1], [0, 0, 1, 1], [], []>} : vector<16x64xbf16>, vector<64x4xbf16>, vector<16x4xf32> -> vector<16x4xf32>
    %c0_69 = arith.constant 0 : index
    %c0_70 = arith.constant 0 : index
    %98 = vector.load %arg11[%c0_69, %c0_70] : memref<1x4xf32, #tpu.memory_space<vmem>>, vector<1x4xf32>
    %99 = vector.broadcast %98 : vector<1x4xf32> to vector<16x4xf32>
    %100 = arith.addf %97, %99 : vector<16x4xf32>
    %c0_71 = arith.constant 0 : index
    %c0_72 = arith.constant 0 : index
    %101 = vector.load %arg12[%c0_71, %c0_72] : memref<16x4xf32, #tpu.memory_space<vmem>>, vector<16x4xf32>
    tpu.vector_store %arg12[%c0_71, %c0_72], %100 {strides = array<i32>} : memref<16x4xf32, #tpu.memory_space<vmem>>, vector<16x4xf32>,
    return
  }
  func.func @transform_0(%arg0: i32) -> (i32, i32) {
    %c0_i32 = arith.constant 0 : i32
    %c0_i32_0 = arith.constant 0 : i32
    return %arg0, %c0_i32 : i32, i32
  }
  func.func @transform_1(%arg0: i32) -> (i32, i32) {
    %c0_i32 = arith.constant 0 : i32
    %c0_i32_0 = arith.constant 0 : i32
    %c0_i32_1 = arith.constant 0 : i32
    return %c0_i32, %c0_i32_0 : i32, i32
  }
  func.func @transform_2(%arg0: i32) -> (i32, i32) {
    %c0_i32 = arith.constant 0 : i32
    %c0_i32_0 = arith.constant 0 : i32
    %c0_i32_1 = arith.constant 0 : i32
    return %c0_i32, %c0_i32_0 : i32, i32
  }
  func.func @transform_3(%arg0: i32) -> (i32, i32, i32) {
    %c0_i32 = arith.constant 0 : i32
    %c0_i32_0 = arith.constant 0 : i32
    %c0_i32_1 = arith.constant 0 : i32
    %c0_i32_2 = arith.constant 0 : i32
    return %c0_i32, %c0_i32_0, %c0_i32_1 : i32, i32, i32
  }
  func.func @transform_4(%arg0: i32) -> (i32, i32, i32) {
    %c0_i32 = arith.constant 0 : i32
    %c0_i32_0 = arith.constant 0 : i32
    %c0_i32_1 = arith.constant 0 : i32
    %c0_i32_2 = arith.constant 0 : i32
    return %c0_i32, %c0_i32_0, %c0_i32_1 : i32, i32, i32
  }
  func.func @transform_5(%arg0: i32) -> (i32, i32, i32) {
    %c0_i32 = arith.constant 0 : i32
    %c0_i32_0 = arith.constant 0 : i32
    %c0_i32_1 = arith.constant 0 : i32
    %c0_i32_2 = arith.constant 0 : i32
    return %c0_i32, %c0_i32_0, %c0_i32_1 : i32, i32, i32
  }
  func.func @transform_6(%arg0: i32) -> (i32, i32, i32) {
    %c0_i32 = arith.constant 0 : i32
    %c0_i32_0 = arith.constant 0 : i32
    %c0_i32_1 = arith.constant 0 : i32
    %c0_i32_2 = arith.constant 0 : i32
    return %c0_i32, %c0_i32_0, %c0_i32_1 : i32, i32, i32
  }
  func.func @transform_7(%arg0: i32) -> (i32, i32, i32) {
    %c0_i32 = arith.constant 0 : i32
    %c0_i32_0 = arith.constant 0 : i32
    %c0_i32_1 = arith.constant 0 : i32
    %c0_i32_2 = arith.constant 0 : i32
    return %c0_i32, %c0_i32_0, %c0_i32_1 : i32, i32, i32
  }
  func.func @transform_8(%arg0: i32) -> (i32, i32, i32) {
    %c0_i32 = arith.constant 0 : i32
    %c0_i32_0 = arith.constant 0 : i32
    %c0_i32_1 = arith.constant 0 : i32
    %c0_i32_2 = arith.constant 0 : i32
    return %c0_i32, %c0_i32_0, %c0_i32_1 : i32, i32, i32
  }
  func.func @transform_9(%arg0: i32) -> (i32, i32) {
    %c0_i32 = arith.constant 0 : i32
    %c0_i32_0 = arith.constant 0 : i32
    %c0_i32_1 = arith.constant 0 : i32
    return %c0_i32, %c0_i32_0 : i32, i32
  }
  func.func @transform_10(%arg0: i32) -> (i32, i32) {
    %c0_i32 = arith.constant 0 : i32
    %c0_i32_0 = arith.constant 0 : i32
    %c0_i32_1 = arith.constant 0 : i32
    return %c0_i32, %c0_i32_0 : i32, i32
  }
  func.func @transform_11(%arg0: i32) -> (i32, i32) {
    %c0_i32 = arith.constant 0 : i32
    %c0_i32_0 = arith.constant 0 : i32
    return %arg0, %c0_i32 : i32, i32
  }
}

</mosaic_0001>

<llo_original>
// kernel: tpu_custom_call.1
$region0: #{tpu_custom_call.1}
  #allocation0 [shape = 'u32[]', space=smem, size = 0x4, offset = 0x4, fixed_abs, tag = 'smem constant byte address 0x4 - core index']
  #allocation1 [shape = 'u32[144,128]{1,0:T(1,128)}', space=vmem, size = 0x12000, scoped, tag = 'internal scratch']
  %s0 = inlined_call_operand.vmem [shape: bf16[16,20], index: 0, kind: input, shape index: {}]
  %s1 = inlined_call_operand.vmem [shape: bf16[8,64], index: 1, kind: input, shape index: {}]
  %s2 = inlined_call_operand.vmem [shape: f32[1,64], index: 2, kind: input, shape index: {}]
  %s3 = inlined_call_operand.vmem [shape: bf16[2,12,128], index: 3, kind: input, shape index: {}]
  %s4 = inlined_call_operand.vmem [shape: f32[2,1,128], index: 4, kind: input, shape index: {}]
  %s5 = inlined_call_operand.hbm [shape: bf16[3,64,64], index: 5, kind: input, shape index: {}]
  %s6 = inlined_call_operand.vmem [shape: f32[3,1,64], index: 6, kind: input, shape index: {}]
  %s7 = inlined_call_operand.hbm [shape: bf16[3,64,64], index: 7, kind: input, shape index: {}]
  %s8 = inlined_call_operand.vmem [shape: f32[3,1,64], index: 8, kind: input, shape index: {}]
  %s9 = inlined_call_operand.vmem [shape: bf16[64,4], index: 9, kind: input, shape index: {}]
  %s10 = inlined_call_operand.vmem [shape: f32[1,4], index: 10, kind: input, shape index: {}]
  %s11 = inlined_call_operand.vmem [shape: f32[16,4], index: 11, kind: output, shape index: {}]
  %s12 = sld [smem:[#allocation0]]
  $region62: #{tpu_custom_call.1} parent=0
    _
  %s14 = ssub.s32 1, %s12
  %s15 = scalar_select 0, %s14, %s12
  $region1: #{tpu_custom_call.1} parent=0
    #allocation2 [shape = 'u8[49152]{0}', space=vmem, size = 0xc000, scoped, tag = 'input window, operand 5, single buffered']
    #allocation3 [shape = 's32[1]{0}', space=sflag, size = 0x4, scoped, tag = 'scoped memory for tpu_custom_call.1']
    #allocation4 [shape = 'u8[49152]{0}', space=vmem, size = 0xc000, scoped, tag = 'input window, operand 7, single buffered']
    #allocation5 [shape = 's32[1]{0}', space=sflag, size = 0x4, scoped, tag = 'scoped memory for tpu_custom_call.1']
    %16 = vsyncpa [#allocation3], 0
    %17 = vsyncpa [#allocation5], 0
    // Predicated region
    $region2: #{tpu_custom_call.1} parent=1 // pred_check
      _
    $region3: #{tpu_custom_call.1} parent=1 // pred_check_branch
      %19 = sbr.rel (0) target = $region5
    $region4: #{tpu_custom_call.1} parent=1 // pred_region
      _
    $region5: #{tpu_custom_call.1} parent=1 // pred_fallthru
      _
    // Predicated region
    $region6: #{tpu_custom_call.1} parent=1 // pred_check
      _
    $region7: #{tpu_custom_call.1} parent=1 // pred_check_branch
      %21 = sbr.rel (0) target = $region9
    $region8: #{tpu_custom_call.1} parent=1 // pred_region
      _
    $region9: #{tpu_custom_call.1} parent=1 // pred_fallthru
      _
    // Predicated region
    $region10: #{tpu_custom_call.1} parent=1 // pred_check
      _
    $region11: #{tpu_custom_call.1} parent=1 // pred_check_branch
      %23 = sbr.rel (0) target = $region13
    $region12: #{tpu_custom_call.1} parent=1 // pred_region
      _
    $region13: #{tpu_custom_call.1} parent=1 // pred_fallthru
      _
    // Predicated region
    $region14: #{tpu_custom_call.1} parent=1 // pred_check
      _
    $region15: #{tpu_custom_call.1} parent=1 // pred_check_branch
      %25 = sbr.rel (0) target = $region17
    $region16: #{tpu_custom_call.1} parent=1 // pred_region
      _
    $region17: #{tpu_custom_call.1} parent=1 // pred_fallthru
      _
    // Predicated region
    $region18: #{tpu_custom_call.1} parent=1 // pred_check
      _
    $region19: #{tpu_custom_call.1} parent=1 // pred_check_branch
      %27 = sbr.rel (0) target = $region21
    $region20: #{tpu_custom_call.1} parent=1 // pred_region
      _
    $region21: #{tpu_custom_call.1} parent=1 // pred_fallthru
      _
    // Predicated region
    $region22: #{tpu_custom_call.1} parent=1 // pred_check
      _
    $region23: #{tpu_custom_call.1} parent=1 // pred_check_branch
      %29 = sbr.rel (0) target = $region25
    $region24: #{tpu_custom_call.1} parent=1 // pred_region
      %s31 = ssub.s32 1536, 1536
      %32 = vsyncadd [#allocation3], %s31
      %s33 = sshll.u32 [#allocation2], 4
      %s34 = int_to_ptr.vmem [resolvable:$true] %s33
      %39 = dma.hbm_to_vmem [thread:$0]  %s5, 1536, %s34, [#allocation3], 64, 64, 4
    $region25: #{tpu_custom_call.1} parent=1 // pred_fallthru
      _
    // Predicated region
    $region26: #{tpu_custom_call.1} parent=1 // pred_check
      _
    $region27: #{tpu_custom_call.1} parent=1 // pred_check_branch
      %41 = sbr.rel (0) target = $region29
    $region28: #{tpu_custom_call.1} parent=1 // pred_region
      _
    $region29: #{tpu_custom_call.1} parent=1 // pred_fallthru
      _
    // Predicated region
    $region30: #{tpu_custom_call.1} parent=1 // pred_check
      _
    $region31: #{tpu_custom_call.1} parent=1 // pred_check_branch
      %43 = sbr.rel (0) target = $region33
    $region32: #{tpu_custom_call.1} parent=1 // pred_region
      %s45 = ssub.s32 1536, 1536
      %46 = vsyncadd [#allocation5], %s45
      %s47 = sshll.u32 [#allocation4], 4
      %s48 = int_to_ptr.vmem [resolvable:$true] %s47
      %53 = dma.hbm_to_vmem [thread:$0]  %s7, 1536, %s48, [#allocation5], 64, 64, 4
    $region33: #{tpu_custom_call.1} parent=1 // pred_fallthru
      _
    // Predicated region
    $region34: #{tpu_custom_call.1} parent=1 // pred_check
      _
    $region35: #{tpu_custom_call.1} parent=1 // pred_check_branch
      %55 = sbr.rel (0) target = $region37
    $region36: #{tpu_custom_call.1} parent=1 // pred_region
      _
    $region37: #{tpu_custom_call.1} parent=1 // pred_fallthru
      _
    // Predicated region
    $region38: #{tpu_custom_call.1} parent=1 // pred_check
      _
    $region39: #{tpu_custom_call.1} parent=1 // pred_check_branch
      %57 = sbr.rel (0) target = $region41
    $region40: #{tpu_custom_call.1} parent=1 // pred_region
      _
    $region41: #{tpu_custom_call.1} parent=1 // pred_fallthru
      _
    // Predicated region
    $region42: #{tpu_custom_call.1} parent=1 // pred_check
      _
    $region43: #{tpu_custom_call.1} parent=1 // pred_check_branch
      %59 = sbr.rel (0) target = $region45
    $region44: #{tpu_custom_call.1} parent=1 // pred_region
      _
    $region45: #{tpu_custom_call.1} parent=1 // pred_fallthru
      _
    // Predicated region
    $region46: #{tpu_custom_call.1} parent=1 // pred_check
      _
    $region47: #{tpu_custom_call.1} parent=1 // pred_check_branch
      %61 = sbr.rel (0) target = $region49
    $region48: #{tpu_custom_call.1} parent=1 // pred_region
      %62 = dma.done [#allocation3], 1536
    $region49: #{tpu_custom_call.1} parent=1 // pred_fallthru
      _
    // Predicated region
    $region50: #{tpu_custom_call.1} parent=1 // pred_check
      _
    $region51: #{tpu_custom_call.1} parent=1 // pred_check_branch
      %64 = sbr.rel (0) target = $region53
    $region52: #{tpu_custom_call.1} parent=1 // pred_region
      %65 = dma.done [#allocation5], 1536
    $region53: #{tpu_custom_call.1} parent=1 // pred_fallthru
      _
    %v67 = vld [vmem:[%s0] sm:$0xf]
    %v68 = vld [vmem:[%s0 + $0x4] sm:$0xf]
    %v69 = vld [vmem:[%s1] sm:$0xf]
    %v70 = vld [vmem:[%s2] sm:$0x1]
    %v72 = vlaneseq
    %v73 = vshrl.u32 %v72, 7
    %v74 = vsub.s32 0, %v73
    %v75 = vrot.slane %v70, %v74
    %v79 = vunpack.c.l.b16 %v67
    %v80 = vunpack.c.l.b16 %v68
    %v81 = vpack.c.b16 %v80, %v79
    %vm82 = vcmask 64512
    %v84 = vsel %vm82, %v81, 0
    %vm86 = vcmask 1043456
    %v88 = vsel %vm86, %v69, 0
    %90 = vmatprep.subr.bf16.mxu0 0
    %91 = vmatpush1.bf16.msra.mxu0 %v88
    %92 = vmatprep.subr.bf16.mxu0 0
    %93 = vmatpush1.bf16.msra.mxu0 0
    %94 = vmatprep.subr.bf16.mxu0 0
    %95 = vmatpush1.bf16.msra.mxu0 0
    %96 = vmatprep.subr.bf16.mxu0 0
    %97 = vmatpush1.bf16.msra.mxu0 0
    %98 = vmatprep.subr.bf16.mxu0 0
    %99 = vmatpush1.bf16.msra.mxu0 0
    %100 = vmatprep.subr.bf16.mxu0 0
    %101 = vmatpush1.bf16.msra.mxu0 0
    %102 = vmatprep.subr.bf16.mxu0 0
    %103 = vmatpush1.bf16.msra.mxu0 0
    %104 = vmatprep.subr.bf16.mxu0 0
    %105 = vmatpush1.bf16.msra.mxu0 0
    %106 = vmatprep.subr.bf16.mxu0 0
    %107 = vmatpush1.bf16.msra.mxu0 0
    %108 = vmatprep.subr.bf16.mxu0 0
    %109 = vmatpush1.bf16.msra.mxu0 0
    %110 = vmatprep.subr.bf16.mxu0 0
    %111 = vmatpush1.bf16.msra.mxu0 0
    %112 = vmatprep.subr.bf16.mxu0 0
    %113 = vmatpush1.bf16.msra.mxu0 0
    %114 = vmatprep.subr.bf16.mxu0 0
    %115 = vmatpush1.bf16.msra.mxu0 0
    %116 = vmatprep.subr.bf16.mxu0 0
    %117 = vmatpush1.bf16.msra.mxu0 0
    %118 = vmatprep.subr.bf16.mxu0 0
    %119 = vmatpush1.bf16.msra.mxu0 0
    %120 = vmatprep.subr.bf16.mxu0 0
    %121 = vmatpush1.bf16.msra.mxu0 0
    %122 = vmatprep.mubr.bf16.mxu0 0
    %123 = vmatmul.mubr.bf16.gmra.mrb[0].mxu0 %v84
    %v124 = vpop.f32.mrb[0].mxu0
    %v125 = vadd.f32 %v75, %v124
    %v126 = vpop.f32.mrb[0].mxu0
    %v127 = vpop.f32.mrb[0].mxu0
    %v128 = vadd.f32 %v75, %v127
    %v129 = vpop.f32.mrb[0].mxu0
    %130 = vdwg.mxu0
    %v131 = vld [vmem:[%s3] sm:$0xf]
    %v132 = vld [vmem:[%s3 + $0x4] sm:$0x3]
    %v133 = vld [vmem:[%s4] sm:$0x1]
    %v135 = vlaneseq
    %v136 = vshrl.u32 %v135, 7
    %v137 = vsub.s32 0, %v136
    %v138 = vrot.slane %v133, %v137
    %140 = vrot.lane.b32.xlu0 %v81, 120
    %v141 = vpop.permute.xlu0 %140
    %v144 = vunpack.c.l.b16 %v131
    %v145 = vunpack.c.l.b16 %v132
    %v146 = vpack.c.b16 %v145, %v144
    %vm147 = vcmask 97280
    %v149 = vsel %vm147, %v141, 0
    %vm151 = vcmask 1045504
    %v153 = vsel %vm151, %v146, 0
    %155 = vmatprep.subr.bf16.mxu0 0
    %156 = vmatpush1.bf16.msra.mxu0 %v153
    %157 = vmatprep.subr.bf16.mxu0 0
    %158 = vmatpush1.bf16.msra.mxu0 0
    %159 = vmatprep.subr.bf16.mxu0 0
    %160 = vmatpush1.bf16.msra.mxu0 0
    %161 = vmatprep.subr.bf16.mxu0 0
    %162 = vmatpush1.bf16.msra.mxu0 0
    %163 = vmatprep.subr.bf16.mxu0 0
    %164 = vmatpush1.bf16.msra.mxu0 0
    %165 = vmatprep.subr.bf16.mxu0 0
    %166 = vmatpush1.bf16.msra.mxu0 0
    %167 = vmatprep.subr.bf16.mxu0 0
    %168 = vmatpush1.bf16.msra.mxu0 0
    %169 = vmatprep.subr.bf16.mxu0 0
    %170 = vmatpush1.bf16.msra.mxu0 0
    %171 = vmatprep.subr.bf16.mxu0 0
    %172 = vmatpush1.bf16.msra.mxu0 0
    %173 = vmatprep.subr.bf16.mxu0 0
    %174 = vmatpush1.bf16.msra.mxu0 0
    %175 = vmatprep.subr.bf16.mxu0 0
    %176 = vmatpush1.bf16.msra.mxu0 0
    %177 = vmatprep.subr.bf16.mxu0 0
    %178 = vmatpush1.bf16.msra.mxu0 0
    %179 = vmatprep.subr.bf16.mxu0 0
    %180 = vmatpush1.bf16.msra.mxu0 0
    %181 = vmatprep.subr.bf16.mxu0 0
    %182 = vmatpush1.bf16.msra.mxu0 0
    %183 = vmatprep.subr.bf16.mxu0 0
    %184 = vmatpush1.bf16.msra.mxu0 0
    %185 = vmatprep.subr.bf16.mxu0 0
    %186 = vmatpush1.bf16.msra.mxu0 0
    %187 = vmatprep.mubr.bf16.mxu0 0
    %188 = vmatmul.mubr.bf16.gmra.mrb[0].mxu0 %v149
    %v189 = vpop.f32.mrb[0].mxu0
    %v190 = vadd.f32 %v138, %v189
    %v191 = vpop.f32.mrb[0].mxu0
    %v192 = vpop.f32.mrb[0].mxu0
    %v193 = vadd.f32 %v138, %v192
    %v194 = vpop.f32.mrb[0].mxu0
    %195 = vdwg.mxu0
    %198 = vrot.lane.b32.xlu0 %v125, 64
    %v199 = vpop.permute.xlu0 %198
    %200 = vrot.lane.b32.xlu0 %v128, 64
    %v201 = vpop.permute.xlu0 %200
    %v204 = vmul.f32 %v190, %v199
    %v205 = vmul.f32 %v193, %v201
    %208 = vrot.lane.b32.xlu0 %v190, 64
    %v209 = vpop.permute.xlu0 %208
    %210 = vrot.lane.b32.xlu0 %v193, 64
    %v211 = vpop.permute.xlu0 %210
    %v214 = vadd.f32 %v204, %v209
    %v215 = vadd.f32 %v205, %v211
    %v216 = vmax.f32 %v214, 0.0
    %v217 = vmax.f32 %v215, 0.0
    %v218 = vpack.c.bf16 %v217, %v216
    %v219 = vld [vmem:[#allocation2] sm:$0xf]
    %v220 = vld [vmem:[#allocation2 + $0x4] sm:$0xf]
    %v221 = vld [vmem:[#allocation2 + $0x8] sm:$0xf]
    %v222 = vld [vmem:[#allocation2 + $0xc] sm:$0xf]
    %v223 = vld [vmem:[#allocation2 + $0x10] sm:$0xf]
    %v224 = vld [vmem:[#allocation2 + $0x14] sm:$0xf]
    %v225 = vld [vmem:[#allocation2 + $0x18] sm:$0xf]
    %v226 = vld [vmem:[#allocation2 + $0x1c] sm:$0xf]
    %v227 = vld [vmem:[%s6] sm:$0x1]
    %v229 = vlaneseq
    %v230 = vshrl.u32 %v229, 7
    %v231 = vsub.s32 0, %v230
    %v232 = vrot.slane %v227, %v231
    %235 = vrot.lane.b32.xlu0 %v218, 64
    %v236 = vpop.permute.xlu0 %235
    %v245 = vunpack.c.l.b16 %v219
    %v246 = vunpack.c.l.b16 %v220
    %v247 = vunpack.c.l.b16 %v221
    %v248 = vunpack.c.l.b16 %v222
    %v249 = vunpack.c.l.b16 %v223
    %v250 = vunpack.c.l.b16 %v224
    %v251 = vunpack.c.l.b16 %v225
    %v252 = vunpack.c.l.b16 %v226
    %v253 = vpack.c.b16 %v246, %v245
    %v254 = vpack.c.b16 %v248, %v247
    %v255 = vpack.c.b16 %v250, %v249
    %v256 = vpack.c.b16 %v252, %v251
    %vm261 = vcmask 523264
    %v263 = vsel %vm261, %v236, 0
    %265 = vmatprep.subr.bf16.mxu0 0
    %266 = vmatpush1.bf16.msra.mxu0 %v253
    %267 = vmatprep.subr.bf16.mxu0 0
    %268 = vmatpush1.bf16.msra.mxu0 %v254
    %269 = vmatprep.subr.bf16.mxu0 0
    %270 = vmatpush1.bf16.msra.mxu0 %v255
    %271 = vmatprep.subr.bf16.mxu0 0
    %272 = vmatpush1.bf16.msra.mxu0 %v256
    %273 = vmatprep.subr.bf16.mxu0 0
    %274 = vmatpush1.bf16.msra.mxu0 0
    %275 = vmatprep.subr.bf16.mxu0 0
    %276 = vmatpush1.bf16.msra.mxu0 0
    %277 = vmatprep.subr.bf16.mxu0 0
    %278 = vmatpush1.bf16.msra.mxu0 0
    %279 = vmatprep.subr.bf16.mxu0 0
    %280 = vmatpush1.bf16.msra.mxu0 0
    %281 = vmatprep.subr.bf16.mxu0 0
    %282 = vmatpush1.bf16.msra.mxu0 0
    %283 = vmatprep.subr.bf16.mxu0 0
    %284 = vmatpush1.bf16.msra.mxu0 0
    %285 = vmatprep.subr.bf16.mxu0 0
    %286 = vmatpush1.bf16.msra.mxu0 0
    %287 = vmatprep.subr.bf16.mxu0 0
    %288 = vmatpush1.bf16.msra.mxu0 0
    %289 = vmatprep.subr.bf16.mxu0 0
    %290 = vmatpush1.bf16.msra.mxu0 0
    %291 = vmatprep.subr.bf16.mxu0 0
    %292 = vmatpush1.bf16.msra.mxu0 0
    %293 = vmatprep.subr.bf16.mxu0 0
    %294 = vmatpush1.bf16.msra.mxu0 0
    %295 = vmatprep.subr.bf16.mxu0 0
    %296 = vmatpush1.bf16.msra.mxu0 0
    %297 = vmatprep.mubr.bf16.mxu0 0
    %298 = vmatmul.mubr.bf16.gmra.mrb[0].mxu0 %v263
    %v299 = vpop.f32.mrb[0].mxu0
    %v300 = vadd.f32 %v232, %v299
    %v301 = vpop.f32.mrb[0].mxu0
    %v302 = vpop.f32.mrb[0].mxu0
    %v303 = vadd.f32 %v232, %v302
    %v304 = vpop.f32.mrb[0].mxu0
    %305 = vdwg.mxu0
    %v306 = vmax.f32 %v300, 0.0
    %v307 = vmax.f32 %v303, 0.0
    %v308 = vpack.c.bf16 %v307, %v306
    %v309 = vld [vmem:[#allocation4] sm:$0xf]
    %v310 = vld [vmem:[#allocation4 + $0x4] sm:$0xf]
    %v311 = vld [vmem:[#allocation4 + $0x8] sm:$0xf]
    %v312 = vld [vmem:[#allocation4 + $0xc] sm:$0xf]
    %v313 = vld [vmem:[#allocation4 + $0x10] sm:$0xf]
    %v314 = vld [vmem:[#allocation4 + $0x14] sm:$0xf]
    %v315 = vld [vmem:[#allocation4 + $0x18] sm:$0xf]
    %v316 = vld [vmem:[#allocation4 + $0x1c] sm:$0xf]
    %v317 = vld [vmem:[%s8] sm:$0x1]
    %v319 = vlaneseq
    %v320 = vshrl.u32 %v319, 7
    %v321 = vsub.s32 0, %v320
    %v322 = vrot.slane %v317, %v321
    %v332 = vunpack.c.l.b16 %v309
    %v333 = vunpack.c.l.b16 %v310
    %v334 = vunpack.c.l.b16 %v311
    %v335 = vunpack.c.l.b16 %v312
    %v336 = vunpack.c.l.b16 %v313
    %v337 = vunpack.c.l.b16 %v314
    %v338 = vunpack.c.l.b16 %v315
    %v339 = vunpack.c.l.b16 %v316
    %v340 = vpack.c.b16 %v333, %v332
    %v341 = vpack.c.b16 %v335, %v334
    %v342 = vpack.c.b16 %v337, %v336
    %v343 = vpack.c.b16 %v339, %v338
    %v349 = vsel %vm261, %v308, 0
    %351 = vmatprep.subr.bf16.mxu0 0
    %352 = vmatpush1.bf16.msra.mxu0 %v340
    %353 = vmatprep.subr.bf16.mxu0 0
    %354 = vmatpush1.bf16.msra.mxu0 %v341
    %355 = vmatprep.subr.bf16.mxu0 0
    %356 = vmatpush1.bf16.msra.mxu0 %v342
    %357 = vmatprep.subr.bf16.mxu0 0
    %358 = vmatpush1.bf16.msra.mxu0 %v343
    %359 = vmatprep.subr.bf16.mxu0 0
    %360 = vmatpush1.bf16.msra.mxu0 0
    %361 = vmatprep.subr.bf16.mxu0 0
    %362 = vmatpush1.bf16.msra.mxu0 0
    %363 = vmatprep.subr.bf16.mxu0 0
    %364 = vmatpush1.bf16.msra.mxu0 0
    %365 = vmatprep.subr.bf16.mxu0 0
    %366 = vmatpush1.bf16.msra.mxu0 0
    %367 = vmatprep.subr.bf16.mxu0 0
    %368 = vmatpush1.bf16.msra.mxu0 0
    %369 = vmatprep.subr.bf16.mxu0 0
    %370 = vmatpush1.bf16.msra.mxu0 0
    %371 = vmatprep.subr.bf16.mxu0 0
    %372 = vmatpush1.bf16.msra.mxu0 0
    %373 = vmatprep.subr.bf16.mxu0 0
    %374 = vmatpush1.bf16.msra.mxu0 0
    %375 = vmatprep.subr.bf16.mxu0 0
    %376 = vmatpush1.bf16.msra.mxu0 0
    %377 = vmatprep.subr.bf16.mxu0 0
    %378 = vmatpush1.bf16.msra.mxu0 0
    %379 = vmatprep.subr.bf16.mxu0 0
    %380 = vmatpush1.bf16.msra.mxu0 0
    %381 = vmatprep.subr.bf16.mxu0 0
    %382 = vmatpush1.bf16.msra.mxu0 0
    %383 = vmatprep.mubr.bf16.mxu0 0
    %384 = vmatmul.mubr.bf16.gmra.mrb[0].mxu0 %v349
    %v385 = vpop.f32.mrb[0].mxu0
    %v386 = vadd.f32 %v322, %v385
    %v387 = vpop.f32.mrb[0].mxu0
    %v388 = vpop.f32.mrb[0].mxu0
    %v389 = vadd.f32 %v322, %v388
    %v390 = vpop.f32.mrb[0].mxu0
    %391 = vdwg.mxu0
    %394 = vrot.lane.b32.xlu0 %v386, 64
    %v395 = vpop.permute.xlu0 %394
    %396 = vrot.lane.b32.xlu0 %v389, 64
    %v397 = vpop.permute.xlu0 %396
    %v400 = vadd.f32 %v214, %v395
    %v401 = vadd.f32 %v215, %v397
    %s402 = scalar_lea.vmem %s3, 8
    %v403 = vld [vmem:[%s402] sm:$0xf]
    %v404 = vld [vmem:[%s402 + $0x4] sm:$0x3]
    %s405 = scalar_lea.vmem %s4, 1
    %v406 = vld [vmem:[%s405] sm:$0x1]
    %v408 = vlaneseq
    %v409 = vshrl.u32 %v408, 7
    %v410 = vsub.s32 0, %v409
    %v411 = vrot.slane %v406, %v410
    %v415 = vunpack.c.l.b16 %v403
    %v416 = vunpack.c.l.b16 %v404
    %v417 = vpack.c.b16 %v416, %v415
    %v419 = vsel %vm151, %v417, 0
    %421 = vmatprep.subr.bf16.mxu0 0
    %422 = vmatpush1.bf16.msra.mxu0 %v419
    %423 = vmatprep.subr.bf16.mxu0 0
    %424 = vmatpush1.bf16.msra.mxu0 0
    %425 = vmatprep.subr.bf16.mxu0 0
    %426 = vmatpush1.bf16.msra.mxu0 0
    %427 = vmatprep.subr.bf16.mxu0 0
    %428 = vmatpush1.bf16.msra.mxu0 0
    %429 = vmatprep.subr.bf16.mxu0 0
    %430 = vmatpush1.bf16.msra.mxu0 0
    %431 = vmatprep.subr.bf16.mxu0 0
    %432 = vmatpush1.bf16.msra.mxu0 0
    %433 = vmatprep.subr.bf16.mxu0 0
    %434 = vmatpush1.bf16.msra.mxu0 0
    %435 = vmatprep.subr.bf16.mxu0 0
    %436 = vmatpush1.bf16.msra.mxu0 0
    %437 = vmatprep.subr.bf16.mxu0 0
    %438 = vmatpush1.bf16.msra.mxu0 0
    %439 = vmatprep.subr.bf16.mxu0 0
    %440 = vmatpush1.bf16.msra.mxu0 0
    %441 = vmatprep.subr.bf16.mxu0 0
    %442 = vmatpush1.bf16.msra.mxu0 0
    %443 = vmatprep.subr.bf16.mxu0 0
    %444 = vmatpush1.bf16.msra.mxu0 0
    %445 = vmatprep.subr.bf16.mxu0 0
    %446 = vmatpush1.bf16.msra.mxu0 0
    %447 = vmatprep.subr.bf16.mxu0 0
    %448 = vmatpush1.bf16.msra.mxu0 0
    %449 = vmatprep.subr.bf16.mxu0 0
    %450 = vmatpush1.bf16.msra.mxu0 0
    %451 = vmatprep.subr.bf16.mxu0 0
    %452 = vmatpush1.bf16.msra.mxu0 0
    %453 = vmatprep.mubr.bf16.mxu0 0
    %454 = vmatmul.mubr.bf16.gmra.mrb[0].mxu0 %v149
    %v455 = vpop.f32.mrb[0].mxu0
    %v456 = vadd.f32 %v411, %v455
    %v457 = vpop.f32.mrb[0].mxu0
    %v458 = vpop.f32.mrb[0].mxu0
    %v459 = vadd.f32 %v411, %v458
    %v460 = vpop.f32.mrb[0].mxu0
    %461 = vdwg.mxu0
    %v462 = vmul.f32 %v456, %v400
    %v463 = vmul.f32 %v459, %v401
    %466 = vrot.lane.b32.xlu0 %v456, 64
    %v467 = vpop.permute.xlu0 %466
    %468 = vrot.lane.b32.xlu0 %v459, 64
    %v469 = vpop.permute.xlu0 %468
    %v472 = vadd.f32 %v462, %v467
    %v473 = vadd.f32 %v463, %v469
    %v474 = vmax.f32 %v472, 0.0
    %v475 = vmax.f32 %v473, 0.0
    %v476 = vpack.c.bf16 %v475, %v474
    %s477 = scalar_lea.vmem [#allocation2], 32
    %v478 = vld [vmem:[%s477] sm:$0xf]
    %v479 = vld [vmem:[%s477 + $0x4] sm:$0xf]
    %v480 = vld [vmem:[%s477 + $0x8] sm:$0xf]
    %v481 = vld [vmem:[%s477 + $0xc] sm:$0xf]
    %v482 = vld [vmem:[%s477 + $0x10] sm:$0xf]
    %v483 = vld [vmem:[%s477 + $0x14] sm:$0xf]
    %v484 = vld [vmem:[%s477 + $0x18] sm:$0xf]
    %v485 = vld [vmem:[%s477 + $0x1c] sm:$0xf]
    %s486 = scalar_lea.vmem %s6, 1
    %v487 = vld [vmem:[%s486] sm:$0x1]
    %v489 = vlaneseq
    %v490 = vshrl.u32 %v489, 7
    %v491 = vsub.s32 0, %v490
    %v492 = vrot.slane %v487, %v491
    %495 = vrot.lane.b32.xlu0 %v476, 64
    %v496 = vpop.permute.xlu0 %495
    %v505 = vunpack.c.l.b16 %v478
    %v506 = vunpack.c.l.b16 %v479
    %v507 = vunpack.c.l.b16 %v480
    %v508 = vunpack.c.l.b16 %v481
    %v509 = vunpack.c.l.b16 %v482
    %v510 = vunpack.c.l.b16 %v483
    %v511 = vunpack.c.l.b16 %v484
    %v512 = vunpack.c.l.b16 %v485
    %v513 = vpack.c.b16 %v506, %v505
    %v514 = vpack.c.b16 %v508, %v507
    %v515 = vpack.c.b16 %v510, %v509
    %v516 = vpack.c.b16 %v512, %v511
    %v522 = vsel %vm261, %v496, 0
    %524 = vmatprep.subr.bf16.mxu0 0
    %525 = vmatpush1.bf16.msra.mxu0 %v513
    %526 = vmatprep.subr.bf16.mxu0 0
    %527 = vmatpush1.bf16.msra.mxu0 %v514
    %528 = vmatprep.subr.bf16.mxu0 0
    %529 = vmatpush1.bf16.msra.mxu0 %v515
    %530 = vmatprep.subr.bf16.mxu0 0
    %531 = vmatpush1.bf16.msra.mxu0 %v516
    %532 = vmatprep.subr.bf16.mxu0 0
    %533 = vmatpush1.bf16.msra.mxu0 0
    %534 = vmatprep.subr.bf16.mxu0 0
    %535 = vmatpush1.bf16.msra.mxu0 0
    %536 = vmatprep.subr.bf16.mxu0 0
    %537 = vmatpush1.bf16.msra.mxu0 0
    %538 = vmatprep.subr.bf16.mxu0 0
    %539 = vmatpush1.bf16.msra.mxu0 0
    %540 = vmatprep.subr.bf16.mxu0 0
    %541 = vmatpush1.bf16.msra.mxu0 0
    %542 = vmatprep.subr.bf16.mxu0 0
    %543 = vmatpush1.bf16.msra.mxu0 0
    %544 = vmatprep.subr.bf16.mxu0 0
    %545 = vmatpush1.bf16.msra.mxu0 0
    %546 = vmatprep.subr.bf16.mxu0 0
    %547 = vmatpush1.bf16.msra.mxu0 0
    %548 = vmatprep.subr.bf16.mxu0 0
    %549 = vmatpush1.bf16.msra.mxu0 0
    %550 = vmatprep.subr.bf16.mxu0 0
    %551 = vmatpush1.bf16.msra.mxu0 0
    %552 = vmatprep.subr.bf16.mxu0 0
    %553 = vmatpush1.bf16.msra.mxu0 0
    %554 = vmatprep.subr.bf16.mxu0 0
    %555 = vmatpush1.bf16.msra.mxu0 0
    %556 = vmatprep.mubr.bf16.mxu0 0
    %557 = vmatmul.mubr.bf16.gmra.mrb[0].mxu0 %v522
    %v558 = vpop.f32.mrb[0].mxu0
    %v559 = vadd.f32 %v492, %v558
    %v560 = vpop.f32.mrb[0].mxu0
    %v561 = vpop.f32.mrb[0].mxu0
    %v562 = vadd.f32 %v492, %v561
    %v563 = vpop.f32.mrb[0].mxu0
    %564 = vdwg.mxu0
    %v565 = vmax.f32 %v559, 0.0
    %v566 = vmax.f32 %v562, 0.0
    %v567 = vpack.c.bf16 %v566, %v565
    %s568 = scalar_lea.vmem [#allocation4], 32
    %v569 = vld [vmem:[%s568] sm:$0xf]
    %v570 = vld [vmem:[%s568 + $0x4] sm:$0xf]
    %v571 = vld [vmem:[%s568 + $0x8] sm:$0xf]
    %v572 = vld [vmem:[%s568 + $0xc] sm:$0xf]
    %v573 = vld [vmem:[%s568 + $0x10] sm:$0xf]
    %v574 = vld [vmem:[%s568 + $0x14] sm:$0xf]
    %v575 = vld [vmem:[%s568 + $0x18] sm:$0xf]
    %v576 = vld [vmem:[%s568 + $0x1c] sm:$0xf]
    %s577 = scalar_lea.vmem %s8, 1
    %v578 = vld [vmem:[%s577] sm:$0x1]
    %v580 = vlaneseq
    %v581 = vshrl.u32 %v580, 7
    %v582 = vsub.s32 0, %v581
    %v583 = vrot.slane %v578, %v582
    %v593 = vunpack.c.l.b16 %v569
    %v594 = vunpack.c.l.b16 %v570
    %v595 = vunpack.c.l.b16 %v571
    %v596 = vunpack.c.l.b16 %v572
    %v597 = vunpack.c.l.b16 %v573
    %v598 = vunpack.c.l.b16 %v574
    %v599 = vunpack.c.l.b16 %v575
    %v600 = vunpack.c.l.b16 %v576
    %v601 = vpack.c.b16 %v594, %v593
    %v602 = vpack.c.b16 %v596, %v595
    %v603 = vpack.c.b16 %v598, %v597
    %v604 = vpack.c.b16 %v600, %v599
    %v610 = vsel %vm261, %v567, 0
    %612 = vmatprep.subr.bf16.mxu0 0
    %613 = vmatpush1.bf16.msra.mxu0 %v601
    %614 = vmatprep.subr.bf16.mxu0 0
    %615 = vmatpush1.bf16.msra.mxu0 %v602
    %616 = vmatprep.subr.bf16.mxu0 0
    %617 = vmatpush1.bf16.msra.mxu0 %v603
    %618 = vmatprep.subr.bf16.mxu0 0
    %619 = vmatpush1.bf16.msra.mxu0 %v604
    %620 = vmatprep.subr.bf16.mxu0 0
    %621 = vmatpush1.bf16.msra.mxu0 0
    %622 = vmatprep.subr.bf16.mxu0 0
    %623 = vmatpush1.bf16.msra.mxu0 0
    %624 = vmatprep.subr.bf16.mxu0 0
    %625 = vmatpush1.bf16.msra.mxu0 0
    %626 = vmatprep.subr.bf16.mxu0 0
    %627 = vmatpush1.bf16.msra.mxu0 0
    %628 = vmatprep.subr.bf16.mxu0 0
    %629 = vmatpush1.bf16.msra.mxu0 0
    %630 = vmatprep.subr.bf16.mxu0 0
    %631 = vmatpush1.bf16.msra.mxu0 0
    %632 = vmatprep.subr.bf16.mxu0 0
    %633 = vmatpush1.bf16.msra.mxu0 0
    %634 = vmatprep.subr.bf16.mxu0 0
    %635 = vmatpush1.bf16.msra.mxu0 0
    %636 = vmatprep.subr.bf16.mxu0 0
    %637 = vmatpush1.bf16.msra.mxu0 0
    %638 = vmatprep.subr.bf16.mxu0 0
    %639 = vmatpush1.bf16.msra.mxu0 0
    %640 = vmatprep.subr.bf16.mxu0 0
    %641 = vmatpush1.bf16.msra.mxu0 0
    %642 = vmatprep.subr.bf16.mxu0 0
    %643 = vmatpush1.bf16.msra.mxu0 0
    %644 = vmatprep.mubr.bf16.mxu0 0
    %645 = vmatmul.mubr.bf16.gmra.mrb[0].mxu0 %v610
    %v646 = vpop.f32.mrb[0].mxu0
    %v647 = vadd.f32 %v583, %v646
    %v648 = vpop.f32.mrb[0].mxu0
    %v649 = vpop.f32.mrb[0].mxu0
    %v650 = vadd.f32 %v583, %v649
    %v651 = vpop.f32.mrb[0].mxu0
    %652 = vdwg.mxu0
    %655 = vrot.lane.b32.xlu0 %v647, 64
    %v656 = vpop.permute.xlu0 %655
    %657 = vrot.lane.b32.xlu0 %v650, 64
    %v658 = vpop.permute.xlu0 %657
    %v661 = vadd.f32 %v472, %v656
    %v662 = vadd.f32 %v473, %v658
    %v663 = vmax.f32 %v661, 0.0
    %v664 = vmax.f32 %v662, 0.0
    %v665 = vpack.c.bf16 %v664, %v663
    %s666 = scalar_lea.vmem [#allocation2], 64
    %v667 = vld [vmem:[%s666] sm:$0xf]
    %v668 = vld [vmem:[%s666 + $0x4] sm:$0xf]
    %v669 = vld [vmem:[%s666 + $0x8] sm:$0xf]
    %v670 = vld [vmem:[%s666 + $0xc] sm:$0xf]
    %v671 = vld [vmem:[%s666 + $0x10] sm:$0xf]
    %v672 = vld [vmem:[%s666 + $0x14] sm:$0xf]
    %v673 = vld [vmem:[%s666 + $0x18] sm:$0xf]
    %v674 = vld [vmem:[%s666 + $0x1c] sm:$0xf]
    %s675 = scalar_lea.vmem %s6, 2
    %v676 = vld [vmem:[%s675] sm:$0x1]
    %v678 = vlaneseq
    %v679 = vshrl.u32 %v678, 7
    %v680 = vsub.s32 0, %v679
    %v681 = vrot.slane %v676, %v680
    %684 = vrot.lane.b32.xlu0 %v665, 64
    %v685 = vpop.permute.xlu0 %684
    %v694 = vunpack.c.l.b16 %v667
    %v695 = vunpack.c.l.b16 %v668
    %v696 = vunpack.c.l.b16 %v669
    %v697 = vunpack.c.l.b16 %v670
    %v698 = vunpack.c.l.b16 %v671
    %v699 = vunpack.c.l.b16 %v672
    %v700 = vunpack.c.l.b16 %v673
    %v701 = vunpack.c.l.b16 %v674
    %v702 = vpack.c.b16 %v695, %v694
    %v703 = vpack.c.b16 %v697, %v696
    %v704 = vpack.c.b16 %v699, %v698
    %v705 = vpack.c.b16 %v701, %v700
    %v711 = vsel %vm261, %v685, 0
    %713 = vmatprep.subr.bf16.mxu0 0
    %714 = vmatpush1.bf16.msra.mxu0 %v702
    %715 = vmatprep.subr.bf16.mxu0 0
    %716 = vmatpush1.bf16.msra.mxu0 %v703
    %717 = vmatprep.subr.bf16.mxu0 0
    %718 = vmatpush1.bf16.msra.mxu0 %v704
    %719 = vmatprep.subr.bf16.mxu0 0
    %720 = vmatpush1.bf16.msra.mxu0 %v705
    %721 = vmatprep.subr.bf16.mxu0 0
    %722 = vmatpush1.bf16.msra.mxu0 0
    %723 = vmatprep.subr.bf16.mxu0 0
    %724 = vmatpush1.bf16.msra.mxu0 0
    %725 = vmatprep.subr.bf16.mxu0 0
    %726 = vmatpush1.bf16.msra.mxu0 0
    %727 = vmatprep.subr.bf16.mxu0 0
    %728 = vmatpush1.bf16.msra.mxu0 0
    %729 = vmatprep.subr.bf16.mxu0 0
    %730 = vmatpush1.bf16.msra.mxu0 0
    %731 = vmatprep.subr.bf16.mxu0 0
    %732 = vmatpush1.bf16.msra.mxu0 0
    %733 = vmatprep.subr.bf16.mxu0 0
    %734 = vmatpush1.bf16.msra.mxu0 0
    %735 = vmatprep.subr.bf16.mxu0 0
    %736 = vmatpush1.bf16.msra.mxu0 0
    %737 = vmatprep.subr.bf16.mxu0 0
    %738 = vmatpush1.bf16.msra.mxu0 0
    %739 = vmatprep.subr.bf16.mxu0 0
    %740 = vmatpush1.bf16.msra.mxu0 0
    %741 = vmatprep.subr.bf16.mxu0 0
    %742 = vmatpush1.bf16.msra.mxu0 0
    %743 = vmatprep.subr.bf16.mxu0 0
    %744 = vmatpush1.bf16.msra.mxu0 0
    %745 = vmatprep.mubr.bf16.mxu0 0
    %746 = vmatmul.mubr.bf16.gmra.mrb[0].mxu0 %v711
    %v747 = vpop.f32.mrb[0].mxu0
    %v748 = vadd.f32 %v681, %v747
    %v749 = vpop.f32.mrb[0].mxu0
    %v750 = vpop.f32.mrb[0].mxu0
    %v751 = vadd.f32 %v681, %v750
    %v752 = vpop.f32.mrb[0].mxu0
    %753 = vdwg.mxu0
    %v754 = vmax.f32 %v748, 0.0
    %v755 = vmax.f32 %v751, 0.0
    %v756 = vpack.c.bf16 %v755, %v754
    %s757 = scalar_lea.vmem [#allocation4], 64
    %v758 = vld [vmem:[%s757] sm:$0xf]
    %v759 = vld [vmem:[%s757 + $0x4] sm:$0xf]
    %v760 = vld [vmem:[%s757 + $0x8] sm:$0xf]
    %v761 = vld [vmem:[%s757 + $0xc] sm:$0xf]
    %v762 = vld [vmem:[%s757 + $0x10] sm:$0xf]
    %v763 = vld [vmem:[%s757 + $0x14] sm:$0xf]
    %v764 = vld [vmem:[%s757 + $0x18] sm:$0xf]
    %v765 = vld [vmem:[%s757 + $0x1c] sm:$0xf]
    %s766 = scalar_lea.vmem %s8, 2
    %v767 = vld [vmem:[%s766] sm:$0x1]
    %v769 = vlaneseq
    %v770 = vshrl.u32 %v769, 7
    %v771 = vsub.s32 0, %v770
    %v772 = vrot.slane %v767, %v771
    %v782 = vunpack.c.l.b16 %v758
    %v783 = vunpack.c.l.b16 %v759
    %v784 = vunpack.c.l.b16 %v760
    %v785 = vunpack.c.l.b16 %v761
    %v786 = vunpack.c.l.b16 %v762
    %v787 = vunpack.c.l.b16 %v763
    %v788 = vunpack.c.l.b16 %v764
    %v789 = vunpack.c.l.b16 %v765
    %v790 = vpack.c.b16 %v783, %v782
    %v791 = vpack.c.b16 %v785, %v784
    %v792 = vpack.c.b16 %v787, %v786
    %v793 = vpack.c.b16 %v789, %v788
    %v799 = vsel %vm261, %v756, 0
    %801 = vmatprep.subr.bf16.mxu0 0
    %802 = vmatpush1.bf16.msra.mxu0 %v790
    %803 = vmatprep.subr.bf16.mxu0 0
    %804 = vmatpush1.bf16.msra.mxu0 %v791
    %805 = vmatprep.subr.bf16.mxu0 0
    %806 = vmatpush1.bf16.msra.mxu0 %v792
    %807 = vmatprep.subr.bf16.mxu0 0
    %808 = vmatpush1.bf16.msra.mxu0 %v793
    %809 = vmatprep.subr.bf16.mxu0 0
    %810 = vmatpush1.bf16.msra.mxu0 0
    %811 = vmatprep.subr.bf16.mxu0 0
    %812 = vmatpush1.bf16.msra.mxu0 0
    %813 = vmatprep.subr.bf16.mxu0 0
    %814 = vmatpush1.bf16.msra.mxu0 0
    %815 = vmatprep.subr.bf16.mxu0 0
    %816 = vmatpush1.bf16.msra.mxu0 0
    %817 = vmatprep.subr.bf16.mxu0 0
    %818 = vmatpush1.bf16.msra.mxu0 0
    %819 = vmatprep.subr.bf16.mxu0 0
    %820 = vmatpush1.bf16.msra.mxu0 0
    %821 = vmatprep.subr.bf16.mxu0 0
    %822 = vmatpush1.bf16.msra.mxu0 0
    %823 = vmatprep.subr.bf16.mxu0 0
    %824 = vmatpush1.bf16.msra.mxu0 0
    %825 = vmatprep.subr.bf16.mxu0 0
    %826 = vmatpush1.bf16.msra.mxu0 0
    %827 = vmatprep.subr.bf16.mxu0 0
    %828 = vmatpush1.bf16.msra.mxu0 0
    %829 = vmatprep.subr.bf16.mxu0 0
    %830 = vmatpush1.bf16.msra.mxu0 0
    %831 = vmatprep.subr.bf16.mxu0 0
    %832 = vmatpush1.bf16.msra.mxu0 0
    %833 = vmatprep.mubr.bf16.mxu0 0
    %834 = vmatmul.mubr.bf16.gmra.mrb[0].mxu0 %v799
    %v835 = vpop.f32.mrb[0].mxu0
    %v836 = vadd.f32 %v772, %v835
    %v837 = vpop.f32.mrb[0].mxu0
    %v838 = vpop.f32.mrb[0].mxu0
    %v839 = vadd.f32 %v772, %v838
    %v840 = vpop.f32.mrb[0].mxu0
    %841 = vdwg.mxu0
    %844 = vrot.lane.b32.xlu0 %v836, 64
    %v845 = vpop.permute.xlu0 %844
    %846 = vrot.lane.b32.xlu0 %v839, 64
    %v847 = vpop.permute.xlu0 %846
    %v850 = vadd.f32 %v661, %v845
    %v851 = vadd.f32 %v662, %v847
    %v852 = vmax.f32 %v850, 0.0
    %v853 = vmax.f32 %v851, 0.0
    %v854 = vpack.c.bf16 %v853, %v852
    %v855 = vld [vmem:[%s9] sm:$0xf]
    %v856 = vld [vmem:[%s9 + $0x4] sm:$0xf]
    %v857 = vld [vmem:[%s9 + $0x8] sm:$0xf]
    %v858 = vld [vmem:[%s9 + $0xc] sm:$0xf]
    %v859 = vld [vmem:[%s9 + $0x10] sm:$0xf]
    %v860 = vld [vmem:[%s9 + $0x14] sm:$0xf]
    %v861 = vld [vmem:[%s9 + $0x18] sm:$0xf]
    %v862 = vld [vmem:[%s9 + $0x1c] sm:$0xf]
    %v863 = vld [vmem:[%s10] sm:$0x1]
    %v865 = vlaneseq
    %v866 = vshrl.u32 %v865, 7
    %v867 = vsub.s32 0, %v866
    %v868 = vrot.slane %v863, %v867
    %871 = vrot.lane.b32.xlu0 %v854, 64
    %v872 = vpop.permute.xlu0 %871
    %v881 = vunpack.c.l.b16 %v855
    %v882 = vunpack.c.l.b16 %v856
    %v883 = vunpack.c.l.b16 %v857
    %v884 = vunpack.c.l.b16 %v858
    %v885 = vunpack.c.l.b16 %v859
    %v886 = vunpack.c.l.b16 %v860
    %v887 = vunpack.c.l.b16 %v861
    %v888 = vunpack.c.l.b16 %v862
    %v889 = vpack.c.b16 %v882, %v881
    %v890 = vpack.c.b16 %v884, %v883
    %v891 = vpack.c.b16 %v886, %v885
    %v892 = vpack.c.b16 %v888, %v887
    %v898 = vsel %vm261, %v872, 0
    %900 = vmatprep.subr.bf16.mxu0 0
    %901 = vmatpush1.bf16.msra.mxu0 %v889
    %902 = vmatprep.subr.bf16.mxu0 0
    %903 = vmatpush1.bf16.msra.mxu0 %v890
    %904 = vmatprep.subr.bf16.mxu0 0
    %905 = vmatpush1.bf16.msra.mxu0 %v891
    %906 = vmatprep.subr.bf16.mxu0 0
    %907 = vmatpush1.bf16.msra.mxu0 %v892
    %908 = vmatprep.subr.bf16.mxu0 0
    %909 = vmatpush1.bf16.msra.mxu0 0
    %910 = vmatprep.subr.bf16.mxu0 0
    %911 = vmatpush1.bf16.msra.mxu0 0
    %912 = vmatprep.subr.bf16.mxu0 0
    %913 = vmatpush1.bf16.msra.mxu0 0
    %914 = vmatprep.subr.bf16.mxu0 0
    %915 = vmatpush1.bf16.msra.mxu0 0
    %916 = vmatprep.subr.bf16.mxu0 0
    %917 = vmatpush1.bf16.msra.mxu0 0
    %918 = vmatprep.subr.bf16.mxu0 0
    %919 = vmatpush1.bf16.msra.mxu0 0
    %920 = vmatprep.subr.bf16.mxu0 0
    %921 = vmatpush1.bf16.msra.mxu0 0
    %922 = vmatprep.subr.bf16.mxu0 0
    %923 = vmatpush1.bf16.msra.mxu0 0
    %924 = vmatprep.subr.bf16.mxu0 0
    %925 = vmatpush1.bf16.msra.mxu0 0
    %926 = vmatprep.subr.bf16.mxu0 0
    %927 = vmatpush1.bf16.msra.mxu0 0
    %928 = vmatprep.subr.bf16.mxu0 0
    %929 = vmatpush1.bf16.msra.mxu0 0
    %930 = vmatprep.subr.bf16.mxu0 0
    %931 = vmatpush1.bf16.msra.mxu0 0
    %932 = vmatprep.mubr.bf16.mxu0 0
    %933 = vmatmul.mubr.bf16.gmra.mrb[0].mxu0 %v898
    %v934 = vpop.f32.mrb[0].mxu0
    %v935 = vadd.f32 %v868, %v934
    %v936 = vpop.f32.mrb[0].mxu0
    %v937 = vpop.f32.mrb[0].mxu0
    %v938 = vadd.f32 %v868, %v937
    %v939 = vpop.f32.mrb[0].mxu0
    %940 = vdwg.mxu0
    %vm941 = vcmask 31744
    %942 = vst.msk [vmem:[%s11] sm:$0xff] %vm941, %v935
    %943 = vst.msk [vmem:[%s11 + $0x8] sm:$0xff] %vm941, %v938
    // Predicated region
    $region54: #{tpu_custom_call.1} parent=1 // pred_check
      _
    $region55: #{tpu_custom_call.1} parent=1 // pred_check_branch
      %945 = sbr.rel (0) target = $region57
    $region56: #{tpu_custom_call.1} parent=1 // pred_region
      _
    $region57: #{tpu_custom_call.1} parent=1 // pred_fallthru
      _
    // Predicated region
    $region58: #{tpu_custom_call.1} parent=1 // pred_check
      _
    $region59: #{tpu_custom_call.1} parent=1 // pred_check_branch
      %947 = sbr.rel (0) target = $region61
    $region60: #{tpu_custom_call.1} parent=1 // pred_region
      _
    $region61: #{tpu_custom_call.1} parent=1 // pred_fallthru
      _
    %948 = vsyncpa [#allocation3], 1
    %949 = vsyncpa [#allocation5], 1

</llo_original>
